<compile_context>
chip_gen: v7x
topology: tpu7x:2x2x1
jax: 0.10.0
libtpu: 0.0.40
codegen_flags: <defaults>
</compile_context>

<pallas_src>
import functools
import math

import jax
import jax.numpy as jnp
from jax.experimental import pallas as pl
from jax.experimental.pallas import tpu as pltpu


def _ffn_kernel(x_ref, b2_ref, phase_ref, o_ref, *, d_input):
    # x_ref    : (TM, d_input)             block of input rows
    # b2_ref   : (d_input, 2*n_freqs)      [2*pi*B | 2*pi*B]
    # phase_ref: (1, 2*n_freqs)            [0 ... 0 | pi/2 ... pi/2]
    # o_ref    : (TM, d_input + 2*n_freqs) output row block, [x | sin | cos]
    x = x_ref[...]
    proj = jnp.dot(x, b2_ref[...], preferred_element_type=jnp.float32)
    # sin(t) on the first half, sin(t + pi/2) = cos(t) on the second half.
    trig = jnp.sin(proj + phase_ref[...])
    o_ref[:, :d_input] = x.astype(o_ref.dtype)
    o_ref[:, d_input:] = trig.astype(o_ref.dtype)


def ffn_forward(x, B, *, row_tile=2048):
    """x: [..., d_input] float32, B: [d_input, n_freqs] float32."""
    assert row_tile % 8 == 0, "row_tile must be a multiple of 8 (sublane)"
    d_input, n_freqs = B.shape
    d_output = d_input + 2 * n_freqs

    lead_shape = x.shape[:-1]
    n_rows = math.prod(lead_shape) if lead_shape else 1
    x2d = x.reshape(n_rows, d_input).astype(jnp.float32)

    # Fold 2*pi into B once (tiny: d_input x n_freqs), duplicate for the
    # fused sin/cos path, and build the pi/2 phase row for the cos half.
    two_pi_b = (2.0 * jnp.pi) * B.astype(jnp.float32)
    b2 = jnp.concatenate([two_pi_b, two_pi_b], axis=1)          # (K, 2F)
    phase = jnp.concatenate(
        [jnp.zeros((1, n_freqs), jnp.float32),
         jnp.full((1, n_freqs), jnp.pi / 2.0, jnp.float32)], axis=1)  # (1, 2F)

    # Row tile: as large as row_tile, but capped so the grid has >= 2 steps
    # (so "parallel" can shard across the 2 TensorCores on v7x).  When the
    # row count is tiny, fall back to a single full-extent block.
    if n_rows >= 8:
        half_rows = -(-n_rows // 2)              # cdiv(n_rows, 2)
        half_rows = -(-half_rows // 8) * 8       # round up to sublane multiple
        tm = min(row_tile, max(8, half_rows))
    else:
        tm = n_rows                              # full-extent degenerate block
    grid = (pl.cdiv(n_rows, tm),)

    itemsize = jnp.dtype(jnp.float32).itemsize
    cost = pl.CostEstimate(
        flops=2 * n_rows * d_input * (2 * n_freqs),
        transcendentals=n_rows * (2 * n_freqs),
        bytes_accessed=(n_rows * d_input + d_input * 2 * n_freqs
                        + n_rows * d_output) * itemsize,
    )

    kernel = functools.partial(_ffn_kernel, d_input=d_input)

    out2d = pl.pallas_call(
        kernel,
        out_shape=jax.ShapeDtypeStruct((n_rows, d_output), x.dtype),
        grid_spec=pltpu.PrefetchScalarGridSpec(
            num_scalar_prefetch=0,
            grid=grid,
            in_specs=[
                pl.BlockSpec((tm, d_input), lambda i: (i, 0)),
                pl.BlockSpec((d_input, 2 * n_freqs), lambda i: (0, 0)),
                pl.BlockSpec((1, 2 * n_freqs), lambda i: (0, 0)),
            ],
            out_specs=pl.BlockSpec((tm, d_output), lambda i: (i, 0)),
        ),
        compiler_params=pltpu.CompilerParams(
            dimension_semantics=("parallel",),
            vmem_limit_bytes=48 * 1024 * 1024,
        ),
        cost_estimate=cost,
    )(x2d, b2, phase)

    return out2d.reshape(*lead_shape, d_output)


def ffn_reference(x, B):
    proj = 2.0 * jnp.pi * (x @ B)
    return jnp.concatenate([x, jnp.sin(proj), jnp.cos(proj)], axis=-1)


if __name__ == "__main__":
    d_input = 4
    n_freqs = 256
    scale = 1.0
    batch, seq = 2, 8

    key = jax.random.PRNGKey(0)
    kx, kb = jax.random.split(key)

    x = jax.random.normal(kx, (batch, seq, d_input), dtype=jnp.float32)
    # Deterministic stand-in for torch.randn((d_input, n_freqs)) * scale
    B = jax.random.normal(kb, (d_input, n_freqs), dtype=jnp.float32) * scale

    out = ffn_forward(x, B)
    out = jax.block_until_ready(out)

    ref = ffn_reference(x, B)
    assert out.shape == (batch, seq, d_input + 2 * n_freqs), out.shape
    assert jnp.allclose(out, ref, atol=1e-4, rtol=1e-4), (
        float(jnp.max(jnp.abs(out - ref))))

    print("KERNEL_OK")
</pallas_src>

<mosaic_0001>
module attributes {stable_mosaic.version = 11 : i64} {
  func.func @_ffn_kernel(%arg0: i32, %arg1: memref<8x4xf32, #tpu.memory_space<vmem>>, %arg2: memref<4x512xf32, #tpu.memory_space<vmem>>, %arg3: memref<1x512xf32, #tpu.memory_space<vmem>>, %arg4: memref<8x516xf32, #tpu.memory_space<vmem>>) attributes {dimension_semantics = [#tpu.dimension_semantics<parallel>], iteration_bounds = array<i64: 2>, scalar_prefetch = 0 : i64, scratch_operands = 0 : i64, tpu.core_type = #tpu.core_type<tc>, window_params = [{transform_indices = @transform_0, window_bounds = array<i64: 8, 4>}, {pipeline_mode = #tpu.pipeline_mode<synchronous>, transform_indices = @transform_1, window_bounds = array<i64: 4, 512>}, {pipeline_mode = #tpu.pipeline_mode<synchronous>, transform_indices = @transform_2, window_bounds = array<i64: 1, 512>}, {transform_indices = @transform_3, window_bounds = array<i64: 8, 516>}]} {
    %c0 = arith.constant 0 : index
    %c0_0 = arith.constant 0 : index
    %0 = vector.load %arg1[%c0, %c0_0] : memref<8x4xf32, #tpu.memory_space<vmem>>, vector<8x4xf32>
    %c0_1 = arith.constant 0 : index
    %c0_2 = arith.constant 0 : index
    %1 = vector.load %arg2[%c0_1, %c0_2] : memref<4x512xf32, #tpu.memory_space<vmem>>, vector<4x512xf32>
    %cst = arith.constant dense<0.000000e+00> : vector<8x512xf32>
    %2 = tpu.matmul %0, %1, %cst {dimension_numbers = #tpu.dot_dimension_numbers<[1], [0], [0], [1], [0, 0, 1, 1], [], []>} : vector<8x4xf32>, vector<4x512xf32>, vector<8x512xf32> -> vector<8x512xf32>
    %c0_3 = arith.constant 0 : index
    %c0_4 = arith.constant 0 : index
    %3 = vector.load %arg3[%c0_3, %c0_4] : memref<1x512xf32, #tpu.memory_space<vmem>>, vector<1x512xf32>
    %4 = vector.broadcast %3 : vector<1x512xf32> to vector<8x512xf32>
    %5 = arith.addf %2, %4 : vector<8x512xf32>
    %6 = math.sin %5 : vector<8x512xf32>
    %c0_5 = arith.constant 0 : index
    %c0_6 = arith.constant 0 : index
    %7 = vector.load %arg4[%c0_5, %c0_6] : memref<8x516xf32, #tpu.memory_space<vmem>>, vector<8x4xf32>
    tpu.vector_store %arg4[%c0_5, %c0_6], %0 {strides = array<i32>} : memref<8x516xf32, #tpu.memory_space<vmem>>, vector<8x4xf32>,
    %c0_7 = arith.constant 0 : index
    %c4 = arith.constant 4 : index
    %8 = vector.load %arg4[%c0_7, %c4] : memref<8x516xf32, #tpu.memory_space<vmem>>, vector<8x512xf32>
    tpu.vector_store %arg4[%c0_7, %c4], %6 {strides = array<i32>} : memref<8x516xf32, #tpu.memory_space<vmem>>, vector<8x512xf32>,
    return
  }
  func.func @transform_0(%arg0: i32) -> (i32, i32) {
    %c0_i32 = arith.constant 0 : i32
    %c0_i32_0 = arith.constant 0 : i32
    return %arg0, %c0_i32 : i32, i32
  }
  func.func @transform_1(%arg0: i32) -> (i32, i32) {
    %c0_i32 = arith.constant 0 : i32
    %c0_i32_0 = arith.constant 0 : i32
    %c0_i32_1 = arith.constant 0 : i32
    return %c0_i32, %c0_i32_0 : i32, i32
  }
  func.func @transform_2(%arg0: i32) -> (i32, i32) {
    %c0_i32 = arith.constant 0 : i32
    %c0_i32_0 = arith.constant 0 : i32
    %c0_i32_1 = arith.constant 0 : i32
    return %c0_i32, %c0_i32_0 : i32, i32
  }
  func.func @transform_3(%arg0: i32) -> (i32, i32) {
    %c0_i32 = arith.constant 0 : i32
    %c0_i32_0 = arith.constant 0 : i32
    return %arg0, %c0_i32 : i32, i32
  }
}

</mosaic_0001>

<llo_original>
// kernel: tpu_custom_call.1
$region0: #{tpu_custom_call.1}
  #allocation0 [shape = 'u32[]', space=smem, size = 0x4, offset = 0x4, fixed_abs, tag = 'smem constant byte address 0x4 - core index']
  #allocation1 [shape = 'u32[144,128]{1,0:T(1,128)}', space=vmem, size = 0x12000, scoped, tag = 'internal scratch']
  %s0 = inlined_call_operand.vmem [shape: f32[16,4], index: 0, kind: input, shape index: {}]
  %s1 = inlined_call_operand.vmem [shape: f32[4,512], index: 1, kind: input, shape index: {}]
  %s2 = inlined_call_operand.vmem [shape: f32[1,512], index: 2, kind: input, shape index: {}]
  %s3 = inlined_call_operand.hbm [shape: f32[16,516], index: 3, kind: output, shape index: {}]
  %s4 = sld [smem:[#allocation0]]
  $region45: #{tpu_custom_call.1} parent=0
    _
  %s6 = ssub.s32 1, %s4
  %s7 = scalar_select 0, %s6, %s4
  $region1: #{tpu_custom_call.1} parent=0
    #allocation2 [shape = 'u8[40960]{0}', space=vmem, size = 0xa000, scoped, tag = 'output window, operand 0']
    #allocation3 [shape = 's32[2]{0}', space=sflag, size = 0x8, scoped, tag = 'scoped memory for tpu_custom_call.1']
    %8 = vsyncpa [#allocation3], 0
    %s9 = scalar_lea.sflag [#allocation3], 1
    %10 = vsyncpa %s9, 0
    loop: start=0, step=1, limit=4
    $region2: #{tpu_custom_call.1} parent=1 // loop_pre_header
      _
    $region3: #{tpu_custom_call.1} parent=1 // loop_header
      %s12 = sphi 0, %s16
      %p13 = scmp.ge.s32.totalorder %s12, 4
      %s22 = sphi 0, %s24
      %s25 = sphi 0, %s22
      %s26 = sphi 0, %s25
      %s42 = sphi 0, %s26
      %s46 = sphi 0, %s46
      %s48 = sphi 0, %s46
      %s49 = sphi 0, %s48
      %s63 = sphi 0, %s49
      %s67 = sphi 0, %s67
      %s69 = sphi 0, %s67
      %s70 = sphi 0, %s69
      %s84 = sphi 0, %s70
      %s90 = sphi 0, %s92
      %s93 = sphi 0, %s90
      %s94 = sphi 0, %s93
      %s110 = sphi 0, %s94
    $region4: #{tpu_custom_call.1} parent=1 // loop_header_branch
      %15 = sbr.rel (%p13) target = $region8
    $region5: #{tpu_custom_call.1} parent=1 // loop_body
      %s17 = ssub.s32 %s12, 1
      %s18 = ssub.s32 %s12, 2
      %s19 = sadd.s32 %s12, 1
      %s20 = ssub.s32 %s12, %s19
      %p21 = scmp.eq.s32.totalorder %s20, 0
      %s23 = sadd.s32 %s22, 1
      %s24 = scalar_select %p21, %s22, %s23
      %p27 = pneg %p21
      %p28 = scmp.eq.s32.totalorder %s12, 1
      %p29 = por %p27, %p28
      %p30 = scmp.ne.s32.totalorder %s22, %s25
      %p31 = scmp.eq.s32.totalorder %s12, 0
      %p32 = por %p30, %p31
      %p33 = scmp.ne.s32.totalorder %s22, %s25
      %p34 = scmp.eq.s32.totalorder %s17, 1
      %p35 = por %p33, %p34
      %p36 = scmp.ne.s32.totalorder %s25, %s26
      %p37 = scmp.eq.s32.totalorder %s17, 0
      %p38 = por %p36, %p37
      %p39 = scmp.ne.s32.totalorder %s25, %s26
      %p40 = scmp.eq.s32.totalorder %s18, 1
      %p41 = por %p39, %p40
      %p43 = scmp.ne.s32.totalorder %s26, %s42
      %p44 = scmp.eq.s32.totalorder %s18, 0
      %p45 = por %p43, %p44
      %s47 = sadd.s32 %s46, 1
      %p50 = scmp.eq.s32.totalorder %s12, 1
      %p51 = scmp.ne.s32.totalorder %s46, %s48
      %p52 = scmp.eq.s32.totalorder %s12, 0
      %p53 = por %p51, %p52
      %p54 = scmp.ne.s32.totalorder %s46, %s48
      %p55 = scmp.eq.s32.totalorder %s17, 1
      %p56 = por %p54, %p55
      %p57 = scmp.ne.s32.totalorder %s48, %s49
      %p58 = scmp.eq.s32.totalorder %s17, 0
      %p59 = por %p57, %p58
      %p60 = scmp.ne.s32.totalorder %s48, %s49
      %p61 = scmp.eq.s32.totalorder %s18, 1
      %p62 = por %p60, %p61
      %p64 = scmp.ne.s32.totalorder %s49, %s63
      %p65 = scmp.eq.s32.totalorder %s18, 0
      %p66 = por %p64, %p65
      %s68 = sadd.s32 %s67, 1
      %p71 = scmp.eq.s32.totalorder %s12, 1
      %p72 = scmp.ne.s32.totalorder %s67, %s69
      %p73 = scmp.eq.s32.totalorder %s12, 0
      %p74 = por %p72, %p73
      %p75 = scmp.ne.s32.totalorder %s67, %s69
      %p76 = scmp.eq.s32.totalorder %s17, 1
      %p77 = por %p75, %p76
      %p78 = scmp.ne.s32.totalorder %s69, %s70
      %p79 = scmp.eq.s32.totalorder %s17, 0
      %p80 = por %p78, %p79
      %p81 = scmp.ne.s32.totalorder %s69, %s70
      %p82 = scmp.eq.s32.totalorder %s18, 1
      %p83 = por %p81, %p82
      %p85 = scmp.ne.s32.totalorder %s70, %s84
      %p86 = scmp.eq.s32.totalorder %s18, 0
      %p87 = por %p85, %p86
      %s88 = ssub.s32 %s12, %s19
      %p89 = scmp.eq.s32.totalorder %s88, 0
      %s91 = sadd.s32 %s90, 1
      %s92 = scalar_select %p89, %s90, %s91
      %p95 = pneg %p89
      %p96 = scmp.eq.s32.totalorder %s12, 1
      %p97 = por %p95, %p96
      %p98 = scmp.ne.s32.totalorder %s90, %s93
      %p99 = scmp.eq.s32.totalorder %s12, 0
      %p100 = por %p98, %p99
      %p101 = scmp.ne.s32.totalorder %s90, %s93
      %p102 = scmp.eq.s32.totalorder %s17, 1
      %p103 = por %p101, %p102
      %p104 = scmp.ne.s32.totalorder %s93, %s94
      %p105 = scmp.eq.s32.totalorder %s17, 0
      %p106 = por %p104, %p105
      %p107 = scmp.ne.s32.totalorder %s93, %s94
      %p108 = scmp.eq.s32.totalorder %s18, 1
      %p109 = por %p107, %p108
      %p111 = scmp.ne.s32.totalorder %s94, %s110
      %p112 = scmp.eq.s32.totalorder %s18, 0
      %p113 = por %p111, %p112
      %p114 = scmp.le.s32.totalorder 1, %s12
      %p115 = scmp.lt.s32.totalorder %s12, 3
      %p116 = pnand %p114, %p115
      %p117 = pneg %p116
      // Predicated region
      $region9: #{tpu_custom_call.1} parent=5 // pred_check
        _
      $region10: #{tpu_custom_call.1} parent=5 // pred_check_branch
        %119 = sbr.rel (%p116) target = $region12
      $region11: #{tpu_custom_call.1} parent=5 // pred_region
        %s120 = ssub.s32 %s12, 1
        // Predicated region
        $region13: #{tpu_custom_call.1} parent=11 // pred_check
          %p121 = pneg %p59
        $region14: #{tpu_custom_call.1} parent=11 // pred_check_branch
          %123 = sbr.rel (%p121) target = $region16
        $region15: #{tpu_custom_call.1} parent=11 // pred_region
          _
        $region16: #{tpu_custom_call.1} parent=11 // pred_fallthru
          _
        // Predicated region
        $region17: #{tpu_custom_call.1} parent=11 // pred_check
          %p124 = pneg %p80
        $region18: #{tpu_custom_call.1} parent=11 // pred_check_branch
          %126 = sbr.rel (%p124) target = $region20
        $region19: #{tpu_custom_call.1} parent=11 // pred_region
          _
        $region20: #{tpu_custom_call.1} parent=11 // pred_fallthru
          _
      $region12: #{tpu_custom_call.1} parent=5 // pred_fallthru
        _
      %p127 = scmp.lt.s32.totalorder %s12, 2
      // Predicated region
      $region21: #{tpu_custom_call.1} parent=5 // pred_check
        %p128 = pneg %p127
      $region22: #{tpu_custom_call.1} parent=5 // pred_check_branch
        %130 = sbr.rel (%p128) target = $region24
      $region23: #{tpu_custom_call.1} parent=5 // pred_region
        // Predicated region
        $region25: #{tpu_custom_call.1} parent=23 // pred_check
          %p131 = pneg %p32
        $region26: #{tpu_custom_call.1} parent=23 // pred_check_branch
          %133 = sbr.rel (%p131) target = $region28
        $region27: #{tpu_custom_call.1} parent=23 // pred_region
          %p134 = scmp.lt.s32.totalorder %s12, 1
          %s135 = scalar_select %p134, %s12, 1
          %s136 = smul.addr %s135, 8
          %s137 = scalar_lea.vmem %s0, %s136
        $region28: #{tpu_custom_call.1} parent=23 // pred_fallthru
          _
      $region24: #{tpu_custom_call.1} parent=5 // pred_fallthru
        _
      %p138 = scmp.le.s32.totalorder 1, %s12
      %p139 = scmp.lt.s32.totalorder %s12, 3
      %p140 = pnand %p138, %p139
      %p141 = pneg %p140
      // Predicated region
      $region29: #{tpu_custom_call.1} parent=5 // pred_check
        _
      $region30: #{tpu_custom_call.1} parent=5 // pred_check_branch
        %143 = sbr.rel (%p140) target = $region32
      $region31: #{tpu_custom_call.1} parent=5 // pred_region
        %s144 = ssub.s32 %s12, 1
        %p145 = scmp.lt.s32.totalorder %s17, 1
        %s146 = scalar_select %p145, %s17, 1
        %s147 = smul.addr %s146, 8
        %s148 = scalar_lea.vmem %s0, %s147
        %p149 = pneg %p38
        %p150 = pneg %p35
        %p151 = pneg %p59
        %p152 = pneg %p56
        %p153 = pneg %p80
        %p154 = pneg %p77
        %p155 = pneg %p106
        %p156 = pneg %p103
        %s157 = sand.u32 %s93, 1
        %s158 = scalar_lea.sflag [#allocation3], %s157
        %s159 = sand.u32 %s93, 1
        %s160 = smul.addr %s159, 40
        %s161 = scalar_lea.vmem [#allocation2], %s160
        %p162 = scmp.lt.s32.totalorder %s17, 1
        %s163 = scalar_select %p162, %s17, 1
        %s164 = smul.addr %s163, 8
        %s165 = scalar_lea.vmem %s0, %s164
        %v166 = vld [vmem:[%s165] sm:$0xff]
        %v167 = vld [vmem:[%s1] sm:$0xff]
        %v168 = vld [vmem:[%s1 + $0x8] sm:$0xff]
        %v169 = vld [vmem:[%s2] sm:$0xf]
        %v171 = vlaneseq
        %v172 = vshrl.u32 %v171, 7
        %v173 = vsub.s32 0, %v172
        %v174 = vrot.slane %v169, %v173
        %v175 = vlaneseq
        %v176 = vshrl.u32 %v175, 7
        %v177 = vsub.s32 1, %v176
        %v178 = vrot.slane %v169, %v177
        %v179 = vlaneseq
        %v180 = vshrl.u32 %v179, 7
        %v181 = vsub.s32 2, %v180
        %v182 = vrot.slane %v169, %v181
        %v183 = vlaneseq
        %v184 = vshrl.u32 %v183, 7
        %v185 = vsub.s32 3, %v184
        %v186 = vrot.slane %v169, %v185
        %v193 = vcombine.high %v167, %v167
        %v194 = vcombine.high %v168, %v168
        %vm195 = vcmask 31744
        %v197 = vsel %vm195, %v166, 0
        %vm199 = vcmask 1043456
        %v200 = vsel %vm199, %v167, 0
        %v202 = vsel %vm199, %v193, 0
        %v204 = vsel %vm199, %v168, 0
        %v206 = vsel %vm199, %v194, 0
        %208 = vmatprep.subr.mxu0 %v202
        %209 = vmatpush1.msra.mxu0 %v200
        %210 = vmatprep.subr.mxu0 0.0
        %211 = vmatpush1.msra.mxu0 0.0
        %212 = vmatprep.subr.mxu0 0.0
        %213 = vmatpush1.msra.mxu0 0.0
        %214 = vmatprep.subr.mxu0 0.0
        %215 = vmatpush1.msra.mxu0 0.0
        %216 = vmatprep.subr.mxu0 0.0
        %217 = vmatpush1.msra.mxu0 0.0
        %218 = vmatprep.subr.mxu0 0.0
        %219 = vmatpush1.msra.mxu0 0.0
        %220 = vmatprep.subr.mxu0 0.0
        %221 = vmatpush1.msra.mxu0 0.0
        %222 = vmatprep.subr.mxu0 0.0
        %223 = vmatpush1.msra.mxu0 0.0
        %224 = vmatprep.subr.mxu0 0.0
        %225 = vmatpush1.msra.mxu0 0.0
        %226 = vmatprep.subr.mxu0 0.0
        %227 = vmatpush1.msra.mxu0 0.0
        %228 = vmatprep.subr.mxu0 0.0
        %229 = vmatpush1.msra.mxu0 0.0
        %230 = vmatprep.subr.mxu0 0.0
        %231 = vmatpush1.msra.mxu0 0.0
        %232 = vmatprep.subr.mxu0 0.0
        %233 = vmatpush1.msra.mxu0 0.0
        %234 = vmatprep.subr.mxu0 0.0
        %235 = vmatpush1.msra.mxu0 0.0
        %236 = vmatprep.subr.mxu0 0.0
        %237 = vmatpush1.msra.mxu0 0.0
        %238 = vmatprep.subr.mxu0 0.0
        %239 = vmatpush1.msra.mxu0 0.0
        %240 = vmatprep.subr.mxu0 0.0
        %241 = vmatpush1.msra.mxu0 0.0
        %242 = vmatprep.subr.mxu0 0.0
        %243 = vmatpush1.msra.mxu0 0.0
        %244 = vmatprep.subr.mxu0 0.0
        %245 = vmatpush1.msra.mxu0 0.0
        %246 = vmatprep.subr.mxu0 0.0
        %247 = vmatpush1.msra.mxu0 0.0
        %248 = vmatprep.subr.mxu0 0.0
        %249 = vmatpush1.msra.mxu0 0.0
        %250 = vmatprep.subr.mxu0 0.0
        %251 = vmatpush1.msra.mxu0 0.0
        %252 = vmatprep.subr.mxu0 0.0
        %253 = vmatpush1.msra.mxu0 0.0
        %254 = vmatprep.subr.mxu0 0.0
        %255 = vmatpush1.msra.mxu0 0.0
        %256 = vmatprep.subr.mxu0 0.0
        %257 = vmatpush1.msra.mxu0 0.0
        %258 = vmatprep.subr.mxu0 0.0
        %259 = vmatpush1.msra.mxu0 0.0
        %260 = vmatprep.subr.mxu0 0.0
        %261 = vmatpush1.msra.mxu0 0.0
        %262 = vmatprep.subr.mxu0 0.0
        %263 = vmatpush1.msra.mxu0 0.0
        %264 = vmatprep.subr.mxu0 0.0
        %265 = vmatpush1.msra.mxu0 0.0
        %266 = vmatprep.subr.mxu0 0.0
        %267 = vmatpush1.msra.mxu0 0.0
        %268 = vmatprep.subr.mxu0 0.0
        %269 = vmatpush1.msra.mxu0 0.0
        %270 = vmatprep.subr.mxu0 0.0
        %271 = vmatpush1.msra.mxu0 0.0
        %272 = vmatprep.mubr.f32.mxu0 0.0
        %273 = vmatmul.mubr.f32.gmra.mrb[0].mxu0 %v197
        %v274 = vpop.f32.mrb[0].mxu0
        %v275 = vadd.f32 %v174, %v274
        %v276 = vpop.f32.mrb[0].mxu0
        %v277 = vadd.f32 %v178, %v276
        %278 = vdwg.mxu0
        %279 = vmatprep.subr.mxu0 %v206
        %280 = vmatpush1.msra.mxu0 %v204
        %281 = vmatprep.subr.mxu0 0.0
        %282 = vmatpush1.msra.mxu0 0.0
        %283 = vmatprep.subr.mxu0 0.0
        %284 = vmatpush1.msra.mxu0 0.0
        %285 = vmatprep.subr.mxu0 0.0
        %286 = vmatpush1.msra.mxu0 0.0
        %287 = vmatprep.subr.mxu0 0.0
        %288 = vmatpush1.msra.mxu0 0.0
        %289 = vmatprep.subr.mxu0 0.0
        %290 = vmatpush1.msra.mxu0 0.0
        %291 = vmatprep.subr.mxu0 0.0
        %292 = vmatpush1.msra.mxu0 0.0
        %293 = vmatprep.subr.mxu0 0.0
        %294 = vmatpush1.msra.mxu0 0.0
        %295 = vmatprep.subr.mxu0 0.0
        %296 = vmatpush1.msra.mxu0 0.0
        %297 = vmatprep.subr.mxu0 0.0
        %298 = vmatpush1.msra.mxu0 0.0
        %299 = vmatprep.subr.mxu0 0.0
        %300 = vmatpush1.msra.mxu0 0.0
        %301 = vmatprep.subr.mxu0 0.0
        %302 = vmatpush1.msra.mxu0 0.0
        %303 = vmatprep.subr.mxu0 0.0
        %304 = vmatpush1.msra.mxu0 0.0
        %305 = vmatprep.subr.mxu0 0.0
        %306 = vmatpush1.msra.mxu0 0.0
        %307 = vmatprep.subr.mxu0 0.0
        %308 = vmatpush1.msra.mxu0 0.0
        %309 = vmatprep.subr.mxu0 0.0
        %310 = vmatpush1.msra.mxu0 0.0
        %311 = vmatprep.subr.mxu0 0.0
        %312 = vmatpush1.msra.mxu0 0.0
        %313 = vmatprep.subr.mxu0 0.0
        %314 = vmatpush1.msra.mxu0 0.0
        %315 = vmatprep.subr.mxu0 0.0
        %316 = vmatpush1.msra.mxu0 0.0
        %317 = vmatprep.subr.mxu0 0.0
        %318 = vmatpush1.msra.mxu0 0.0
        %319 = vmatprep.subr.mxu0 0.0
        %320 = vmatpush1.msra.mxu0 0.0
        %321 = vmatprep.subr.mxu0 0.0
        %322 = vmatpush1.msra.mxu0 0.0
        %323 = vmatprep.subr.mxu0 0.0
        %324 = vmatpush1.msra.mxu0 0.0
        %325 = vmatprep.subr.mxu0 0.0
        %326 = vmatpush1.msra.mxu0 0.0
        %327 = vmatprep.subr.mxu0 0.0
        %328 = vmatpush1.msra.mxu0 0.0
        %329 = vmatprep.subr.mxu0 0.0
        %330 = vmatpush1.msra.mxu0 0.0
        %331 = vmatprep.subr.mxu0 0.0
        %332 = vmatpush1.msra.mxu0 0.0
        %333 = vmatprep.subr.mxu0 0.0
        %334 = vmatpush1.msra.mxu0 0.0
        %335 = vmatprep.subr.mxu0 0.0
        %336 = vmatpush1.msra.mxu0 0.0
        %337 = vmatprep.subr.mxu0 0.0
        %338 = vmatpush1.msra.mxu0 0.0
        %339 = vmatprep.subr.mxu0 0.0
        %340 = vmatpush1.msra.mxu0 0.0
        %341 = vmatprep.subr.mxu0 0.0
        %342 = vmatpush1.msra.mxu0 0.0
        %343 = vmatprep.mubr.f32.mxu0 0.0
        %344 = vmatmul.mubr.f32.gmra.mrb[0].mxu0 %v197
        %v345 = vpop.f32.mrb[0].mxu0
        %v346 = vadd.f32 %v182, %v345
        %v347 = vpop.f32.mrb[0].mxu0
        %v348 = vadd.f32 %v186, %v347
        %349 = vdwg.mxu0
        %v350 = vand.u32 2147483647, %v275
        %vm351 = vcmp.le.f32.partialorder %v350, 0.7853982
        %vm352 = vcmp.lt.s32.totalorder %v275, 0
        %v353 = vand.u32 %v275, 2139095040
        %v354 = vshrl.u32 %v353, 23
        %v355 = vsub.s32 %v354, 127
        %v356 = vand.u32 2147483647, %v275
        %v357 = vand.u32 %v356, 8388607
        %v358 = vor.u32 %v357, 8388608
        %v359 = vsub.s32 0, %v358
        %v360 = vadd.s32 %v355, 1
        %vm361 = vcmp.gt.s32.totalorder %v360, 0
        %v362 = vsel %vm361, %v360, 0
        %v363 = vshrl.u32 %v362, 5
        %v364 = vand.u32 %v362, 31
        %v365 = vsub.s32 32, %v364
        %v366 = vshrl.u32 683565275, %v365
        %v367 = vshll.u32 683565275, %v364
        %v368 = vshrl.u32 2475754826, %v365
        %v369 = vor.u32 %v367, %v368
        %v370 = vshll.u32 2475754826, %v364
        %v371 = vshrl.u32 2131351028, %v365
        %v372 = vor.u32 %v370, %v371
        %v373 = vshll.u32 2131351028, %v364
        %v374 = vshrl.u32 2102212464, %v365
        %v375 = vor.u32 %v373, %v374
        %v376 = vshll.u32 2102212464, %v364
        %v377 = vshrl.u32 920167782, %v365
        %v378 = vor.u32 %v376, %v377
        %v379 = vshll.u32 920167782, %v364
        %v380 = vshrl.u32 1326507024, %v365
        %v381 = vor.u32 %v379, %v380
        %vm382 = vcmp.lt.s32.totalorder %v363, 1
        %vm383 = vcmp.lt.s32.totalorder %v363, 2
        %vm384 = vcmp.lt.s32.totalorder %v363, 3
        %vm385 = vcmp.lt.s32.totalorder %v363, 4
        %v386 = vsel %vm382, %v366, %v369
        %v387 = vsel %vm385, %v375, 2102212464
        %v388 = vsel %vm384, %v372, %v387
        %v389 = vsel %vm383, %v386, %v388
        %v390 = vsel %vm382, %v369, %v372
        %v391 = vsel %vm385, %v378, 920167782
        %v392 = vsel %vm384, %v375, %v391
        %v393 = vsel %vm383, %v390, %v392
        %v394 = vsel %vm382, %v372, %v375
        %v395 = vsel %vm385, %v381, 1326507024
        %v396 = vsel %vm384, %v378, %v395
        %v397 = vsel %vm383, %v394, %v396
        %v398 = vshll.u32 %v358, 8
        %v399 = vmul.u32.u64.compose %v398, %v397
        %v400 = vextract.low.u32 %v399
        %v401 = vextract.high.u32 %v399
        %v402 = vmul.u32.u64.compose %v398, %v393
        %v403 = vextract.low.u32 %v402
        %v404 = vextract.high.u32 %v402
        %v405 = vmul.u32 %v398, %v389
        %v406 = vadd.s32 %v401, %v403
        %vm407 = vc.u32 %v401, %v403
        %v408 = vadd.s32 %v404, 1
        %v409 = vsel %vm407, %v408, %v404
        %v410 = vadd.s32 %v405, %v409
        %v411 = vadd.s32 %v410, 536870912
        %v412 = vshrl.u32 %v411, 30
        %v413 = vshll.u32 %v412, 30
        %v414 = vsub.s32 %v410, %v413
        %vm415 = vcmp.lt.s32.totalorder %v414, 0
        %v416 = vsub.s32 0, %v414
        %v417 = vsel %vm415, %v416, %v414
        %v418 = vclz %v417
        %v419 = vsub.s32 %v418, 2
        %vm420 = vcmp.gt.s32.totalorder 0, %v419
        %v421 = vsel %vm420, 0, %v419
        %v422 = vsub.s32 32, %v421
        %v423 = vshll.u32 %v414, %v421
        %v424 = vshrl.u32 %v406, %v422
        %v425 = vor.u32 %v423, %v424
        %v426 = vsub.s32 4294967266, %v421
        %v427 = vadd.s32 %v426, 127
        %v428 = vshll.u32 %v427, 23
        %v429 = vor.u32 4788187, %v428
        %v430 = vand.u32 2147483647, %v429
        %v432 = vcvt.s32.f32 %v425
        %v433 = vmul.f32 %v432, %v430
        %v434 = vxor.u32 %v433, 2147483648
        %v435 = vsel %vm352, %v434, %v433
        %v436 = vsub.s32 4, %v412
        %v437 = vsel %vm352, %v436, %v412
        %v438 = vsel %vm351, %v275, %v435
        %v439 = vsel %vm351, 0, %v437
        %v440 = vcosq.f32.pop %v438
        %v441 = vsinq.f32.pop %v438
        %vm442 = vweird.f32 %v275
        %v443 = vadd.s32 %v439, 3
        %v444 = vand.u32 %v443, 3
        %vm445 = vcmp.lt.s32.totalorder %v444, 2
        %vm446 = vcmp.eq.s32.totalorder %v444, 0
        %v447 = vxor.u32 %v441, 2147483648
        %v448 = vsel %vm446, %v440, %v447
        %vm449 = vcmp.eq.s32.totalorder %v444, 2
        %v450 = vxor.u32 %v440, 2147483648
        %v451 = vsel %vm449, %v450, %v441
        %v452 = vsel %vm445, %v448, %v451
        %v453 = vsel %vm442, nan, %v452
        %v454 = vand.u32 2147483647, %v277
        %vm455 = vcmp.le.f32.partialorder %v454, 0.7853982
        %vm456 = vcmp.lt.s32.totalorder %v277, 0
        %v457 = vand.u32 %v277, 2139095040
        %v458 = vshrl.u32 %v457, 23
        %v459 = vsub.s32 %v458, 127
        %v460 = vand.u32 2147483647, %v277
        %v461 = vand.u32 %v460, 8388607
        %v462 = vor.u32 %v461, 8388608
        %v463 = vsub.s32 0, %v462
        %v464 = vadd.s32 %v459, 1
        %vm465 = vcmp.gt.s32.totalorder %v464, 0
        %v466 = vsel %vm465, %v464, 0
        %v467 = vshrl.u32 %v466, 5
        %v468 = vand.u32 %v466, 31
        %v469 = vsub.s32 32, %v468
        %v470 = vshrl.u32 683565275, %v469
        %v471 = vshll.u32 683565275, %v468
        %v472 = vshrl.u32 2475754826, %v469
        %v473 = vor.u32 %v471, %v472
        %v474 = vshll.u32 2475754826, %v468
        %v475 = vshrl.u32 2131351028, %v469
        %v476 = vor.u32 %v474, %v475
        %v477 = vshll.u32 2131351028, %v468
        %v478 = vshrl.u32 2102212464, %v469
        %v479 = vor.u32 %v477, %v478
        %v480 = vshll.u32 2102212464, %v468
        %v481 = vshrl.u32 920167782, %v469
        %v482 = vor.u32 %v480, %v481
        %v483 = vshll.u32 920167782, %v468
        %v484 = vshrl.u32 1326507024, %v469
        %v485 = vor.u32 %v483, %v484
        %vm486 = vcmp.lt.s32.totalorder %v467, 1
        %vm487 = vcmp.lt.s32.totalorder %v467, 2
        %vm488 = vcmp.lt.s32.totalorder %v467, 3
        %vm489 = vcmp.lt.s32.totalorder %v467, 4
        %v490 = vsel %vm486, %v470, %v473
        %v491 = vsel %vm489, %v479, 2102212464
        %v492 = vsel %vm488, %v476, %v491
        %v493 = vsel %vm487, %v490, %v492
        %v494 = vsel %vm486, %v473, %v476
        %v495 = vsel %vm489, %v482, 920167782
        %v496 = vsel %vm488, %v479, %v495
        %v497 = vsel %vm487, %v494, %v496
        %v498 = vsel %vm486, %v476, %v479
        %v499 = vsel %vm489, %v485, 1326507024
        %v500 = vsel %vm488, %v482, %v499
        %v501 = vsel %vm487, %v498, %v500
        %v502 = vshll.u32 %v462, 8
        %v503 = vmul.u32.u64.compose %v502, %v501
        %v504 = vextract.low.u32 %v503
        %v505 = vextract.high.u32 %v503
        %v506 = vmul.u32.u64.compose %v502, %v497
        %v507 = vextract.low.u32 %v506
        %v508 = vextract.high.u32 %v506
        %v509 = vmul.u32 %v502, %v493
        %v510 = vadd.s32 %v505, %v507
        %vm511 = vc.u32 %v505, %v507
        %v512 = vadd.s32 %v508, 1
        %v513 = vsel %vm511, %v512, %v508
        %v514 = vadd.s32 %v509, %v513
        %v515 = vadd.s32 %v514, 536870912
        %v516 = vshrl.u32 %v515, 30
        %v517 = vshll.u32 %v516, 30
        %v518 = vsub.s32 %v514, %v517
        %vm519 = vcmp.lt.s32.totalorder %v518, 0
        %v520 = vsub.s32 0, %v518
        %v521 = vsel %vm519, %v520, %v518
        %v522 = vclz %v521
        %v523 = vsub.s32 %v522, 2
        %vm524 = vcmp.gt.s32.totalorder 0, %v523
        %v525 = vsel %vm524, 0, %v523
        %v526 = vsub.s32 32, %v525
        %v527 = vshll.u32 %v518, %v525
        %v528 = vshrl.u32 %v510, %v526
        %v529 = vor.u32 %v527, %v528
        %v530 = vsub.s32 4294967266, %v525
        %v531 = vadd.s32 %v530, 127
        %v532 = vshll.u32 %v531, 23
        %v533 = vor.u32 4788187, %v532
        %v534 = vand.u32 2147483647, %v533
        %v536 = vcvt.s32.f32 %v529
        %v537 = vmul.f32 %v536, %v534
        %v538 = vxor.u32 %v537, 2147483648
        %v539 = vsel %vm456, %v538, %v537
        %v540 = vsub.s32 4, %v516
        %v541 = vsel %vm456, %v540, %v516
        %v542 = vsel %vm455, %v277, %v539
        %v543 = vsel %vm455, 0, %v541
        %v544 = vcosq.f32.pop %v542
        %v545 = vsinq.f32.pop %v542
        %vm546 = vweird.f32 %v277
        %v547 = vadd.s32 %v543, 3
        %v548 = vand.u32 %v547, 3
        %vm549 = vcmp.lt.s32.totalorder %v548, 2
        %vm550 = vcmp.eq.s32.totalorder %v548, 0
        %v551 = vxor.u32 %v545, 2147483648
        %v552 = vsel %vm550, %v544, %v551
        %vm553 = vcmp.eq.s32.totalorder %v548, 2
        %v554 = vxor.u32 %v544, 2147483648
        %v555 = vsel %vm553, %v554, %v545
        %v556 = vsel %vm549, %v552, %v555
        %v557 = vsel %vm546, nan, %v556
        %v558 = vand.u32 2147483647, %v346
        %vm559 = vcmp.le.f32.partialorder %v558, 0.7853982
        %vm560 = vcmp.lt.s32.totalorder %v346, 0
        %v561 = vand.u32 %v346, 2139095040
        %v562 = vshrl.u32 %v561, 23
        %v563 = vsub.s32 %v562, 127
        %v564 = vand.u32 2147483647, %v346
        %v565 = vand.u32 %v564, 8388607
        %v566 = vor.u32 %v565, 8388608
        %v567 = vsub.s32 0, %v566
        %v568 = vadd.s32 %v563, 1
        %vm569 = vcmp.gt.s32.totalorder %v568, 0
        %v570 = vsel %vm569, %v568, 0
        %v571 = vshrl.u32 %v570, 5
        %v572 = vand.u32 %v570, 31
        %v573 = vsub.s32 32, %v572
        %v574 = vshrl.u32 683565275, %v573
        %v575 = vshll.u32 683565275, %v572
        %v576 = vshrl.u32 2475754826, %v573
        %v577 = vor.u32 %v575, %v576
        %v578 = vshll.u32 2475754826, %v572
        %v579 = vshrl.u32 2131351028, %v573
        %v580 = vor.u32 %v578, %v579
        %v581 = vshll.u32 2131351028, %v572
        %v582 = vshrl.u32 2102212464, %v573
        %v583 = vor.u32 %v581, %v582
        %v584 = vshll.u32 2102212464, %v572
        %v585 = vshrl.u32 920167782, %v573
        %v586 = vor.u32 %v584, %v585
        %v587 = vshll.u32 920167782, %v572
        %v588 = vshrl.u32 1326507024, %v573
        %v589 = vor.u32 %v587, %v588
        %vm590 = vcmp.lt.s32.totalorder %v571, 1
        %vm591 = vcmp.lt.s32.totalorder %v571, 2
        %vm592 = vcmp.lt.s32.totalorder %v571, 3
        %vm593 = vcmp.lt.s32.totalorder %v571, 4
        %v594 = vsel %vm590, %v574, %v577
        %v595 = vsel %vm593, %v583, 2102212464
        %v596 = vsel %vm592, %v580, %v595
        %v597 = vsel %vm591, %v594, %v596
        %v598 = vsel %vm590, %v577, %v580
        %v599 = vsel %vm593, %v586, 920167782
        %v600 = vsel %vm592, %v583, %v599
        %v601 = vsel %vm591, %v598, %v600
        %v602 = vsel %vm590, %v580, %v583
        %v603 = vsel %vm593, %v589, 1326507024
        %v604 = vsel %vm592, %v586, %v603
        %v605 = vsel %vm591, %v602, %v604
        %v606 = vshll.u32 %v566, 8
        %v607 = vmul.u32.u64.compose %v606, %v605
        %v608 = vextract.low.u32 %v607
        %v609 = vextract.high.u32 %v607
        %v610 = vmul.u32.u64.compose %v606, %v601
        %v611 = vextract.low.u32 %v610
        %v612 = vextract.high.u32 %v610
        %v613 = vmul.u32 %v606, %v597
        %v614 = vadd.s32 %v609, %v611
        %vm615 = vc.u32 %v609, %v611
        %v616 = vadd.s32 %v612, 1
        %v617 = vsel %vm615, %v616, %v612
        %v618 = vadd.s32 %v613, %v617
        %v619 = vadd.s32 %v618, 536870912
        %v620 = vshrl.u32 %v619, 30
        %v621 = vshll.u32 %v620, 30
        %v622 = vsub.s32 %v618, %v621
        %vm623 = vcmp.lt.s32.totalorder %v622, 0
        %v624 = vsub.s32 0, %v622
        %v625 = vsel %vm623, %v624, %v622
        %v626 = vclz %v625
        %v627 = vsub.s32 %v626, 2
        %vm628 = vcmp.gt.s32.totalorder 0, %v627
        %v629 = vsel %vm628, 0, %v627
        %v630 = vsub.s32 32, %v629
        %v631 = vshll.u32 %v622, %v629
        %v632 = vshrl.u32 %v614, %v630
        %v633 = vor.u32 %v631, %v632
        %v634 = vsub.s32 4294967266, %v629
        %v635 = vadd.s32 %v634, 127
        %v636 = vshll.u32 %v635, 23
        %v637 = vor.u32 4788187, %v636
        %v638 = vand.u32 2147483647, %v637
        %v640 = vcvt.s32.f32 %v633
        %v641 = vmul.f32 %v640, %v638
        %v642 = vxor.u32 %v641, 2147483648
        %v643 = vsel %vm560, %v642, %v641
        %v644 = vsub.s32 4, %v620
        %v645 = vsel %vm560, %v644, %v620
        %v646 = vsel %vm559, %v346, %v643
        %v647 = vsel %vm559, 0, %v645
        %v648 = vcosq.f32.pop %v646
        %v649 = vsinq.f32.pop %v646
        %vm650 = vweird.f32 %v346
        %v651 = vadd.s32 %v647, 3
        %v652 = vand.u32 %v651, 3
        %vm653 = vcmp.lt.s32.totalorder %v652, 2
        %vm654 = vcmp.eq.s32.totalorder %v652, 0
        %v655 = vxor.u32 %v649, 2147483648
        %v656 = vsel %vm654, %v648, %v655
        %vm657 = vcmp.eq.s32.totalorder %v652, 2
        %v658 = vxor.u32 %v648, 2147483648
        %v659 = vsel %vm657, %v658, %v649
        %v660 = vsel %vm653, %v656, %v659
        %v661 = vsel %vm650, nan, %v660
        %v662 = vand.u32 2147483647, %v348
        %vm663 = vcmp.le.f32.partialorder %v662, 0.7853982
        %vm664 = vcmp.lt.s32.totalorder %v348, 0
        %v665 = vand.u32 %v348, 2139095040
        %v666 = vshrl.u32 %v665, 23
        %v667 = vsub.s32 %v666, 127
        %v668 = vand.u32 2147483647, %v348
        %v669 = vand.u32 %v668, 8388607
        %v670 = vor.u32 %v669, 8388608
        %v671 = vsub.s32 0, %v670
        %v672 = vadd.s32 %v667, 1
        %vm673 = vcmp.gt.s32.totalorder %v672, 0
        %v674 = vsel %vm673, %v672, 0
        %v675 = vshrl.u32 %v674, 5
        %v676 = vand.u32 %v674, 31
        %v677 = vsub.s32 32, %v676
        %v678 = vshrl.u32 683565275, %v677
        %v679 = vshll.u32 683565275, %v676
        %v680 = vshrl.u32 2475754826, %v677
        %v681 = vor.u32 %v679, %v680
        %v682 = vshll.u32 2475754826, %v676
        %v683 = vshrl.u32 2131351028, %v677
        %v684 = vor.u32 %v682, %v683
        %v685 = vshll.u32 2131351028, %v676
        %v686 = vshrl.u32 2102212464, %v677
        %v687 = vor.u32 %v685, %v686
        %v688 = vshll.u32 2102212464, %v676
        %v689 = vshrl.u32 920167782, %v677
        %v690 = vor.u32 %v688, %v689
        %v691 = vshll.u32 920167782, %v676
        %v692 = vshrl.u32 1326507024, %v677
        %v693 = vor.u32 %v691, %v692
        %vm694 = vcmp.lt.s32.totalorder %v675, 1
        %vm695 = vcmp.lt.s32.totalorder %v675, 2
        %vm696 = vcmp.lt.s32.totalorder %v675, 3
        %vm697 = vcmp.lt.s32.totalorder %v675, 4
        %v698 = vsel %vm694, %v678, %v681
        %v699 = vsel %vm697, %v687, 2102212464
        %v700 = vsel %vm696, %v684, %v699
        %v701 = vsel %vm695, %v698, %v700
        %v702 = vsel %vm694, %v681, %v684
        %v703 = vsel %vm697, %v690, 920167782
        %v704 = vsel %vm696, %v687, %v703
        %v705 = vsel %vm695, %v702, %v704
        %v706 = vsel %vm694, %v684, %v687
        %v707 = vsel %vm697, %v693, 1326507024
        %v708 = vsel %vm696, %v690, %v707
        %v709 = vsel %vm695, %v706, %v708
        %v710 = vshll.u32 %v670, 8
        %v711 = vmul.u32.u64.compose %v710, %v709
        %v712 = vextract.low.u32 %v711
        %v713 = vextract.high.u32 %v711
        %v714 = vmul.u32.u64.compose %v710, %v705
        %v715 = vextract.low.u32 %v714
        %v716 = vextract.high.u32 %v714
        %v717 = vmul.u32 %v710, %v701
        %v718 = vadd.s32 %v713, %v715
        %vm719 = vc.u32 %v713, %v715
        %v720 = vadd.s32 %v716, 1
        %v721 = vsel %vm719, %v720, %v716
        %v722 = vadd.s32 %v717, %v721
        %v723 = vadd.s32 %v722, 536870912
        %v724 = vshrl.u32 %v723, 30
        %v725 = vshll.u32 %v724, 30
        %v726 = vsub.s32 %v722, %v725
        %vm727 = vcmp.lt.s32.totalorder %v726, 0
        %v728 = vsub.s32 0, %v726
        %v729 = vsel %vm727, %v728, %v726
        %v730 = vclz %v729
        %v731 = vsub.s32 %v730, 2
        %vm732 = vcmp.gt.s32.totalorder 0, %v731
        %v733 = vsel %vm732, 0, %v731
        %v734 = vsub.s32 32, %v733
        %v735 = vshll.u32 %v726, %v733
        %v736 = vshrl.u32 %v718, %v734
        %v737 = vor.u32 %v735, %v736
        %v738 = vsub.s32 4294967266, %v733
        %v739 = vadd.s32 %v738, 127
        %v740 = vshll.u32 %v739, 23
        %v741 = vor.u32 4788187, %v740
        %v742 = vand.u32 2147483647, %v741
        %v744 = vcvt.s32.f32 %v737
        %v745 = vmul.f32 %v744, %v742
        %v746 = vxor.u32 %v745, 2147483648
        %v747 = vsel %vm664, %v746, %v745
        %v748 = vsub.s32 4, %v724
        %v749 = vsel %vm664, %v748, %v724
        %v750 = vsel %vm663, %v348, %v747
        %v751 = vsel %vm663, 0, %v749
        %v752 = vcosq.f32.pop %v750
        %v753 = vsinq.f32.pop %v750
        %vm754 = vweird.f32 %v348
        %v755 = vadd.s32 %v751, 3
        %v756 = vand.u32 %v755, 3
        %vm757 = vcmp.lt.s32.totalorder %v756, 2
        %vm758 = vcmp.eq.s32.totalorder %v756, 0
        %v759 = vxor.u32 %v753, 2147483648
        %v760 = vsel %vm758, %v752, %v759
        %vm761 = vcmp.eq.s32.totalorder %v756, 2
        %v762 = vxor.u32 %v752, 2147483648
        %v763 = vsel %vm761, %v762, %v753
        %v764 = vsel %vm757, %v760, %v763
        %v765 = vsel %vm754, nan, %v764
        %766 = vst.msk [vmem:[%s161] sm:$0xff] %vm195, %v166
        %771 = vrot.lane.b32.xlu0 %v453, 4
        %v772 = vpop.permute.xlu0 %771
        %773 = vrot.lane.b32.xlu0 %v557, 4
        %v774 = vpop.permute.xlu0 %773
        %775 = vrot.lane.b32.xlu0 %v661, 4
        %v776 = vpop.permute.xlu0 %775
        %777 = vrot.lane.b32.xlu0 %v765, 4
        %v778 = vpop.permute.xlu0 %777
        %v779 = vsel %vm195, %v772, %v774
        %v780 = vsel %vm195, %v774, %v776
        %v781 = vsel %vm195, %v776, %v778
        %vm787 = vcmask 1047584
        %788 = vst.msk [vmem:[%s161] sm:$0xff] %vm787, %v772
        %789 = vst [vmem:[%s161 + $0x8] sm:$0xff] %v779
        %790 = vst [vmem:[%s161 + $0x10] sm:$0xff] %v780
        %791 = vst [vmem:[%s161 + $0x18] sm:$0xff] %v781
        %792 = vst.msk [vmem:[%s161 + $0x20] sm:$0xff] %vm195, %v778
        %s793 = sand.u32 %s93, 1
        %s794 = scalar_lea.sflag [#allocation3], %s793
        %s795 = sand.u32 %s93, 1
        %s796 = smul.addr %s795, 40
        %s797 = scalar_lea.vmem [#allocation2], %s796
        // Predicated region
        $region33: #{tpu_custom_call.1} parent=31 // pred_check
          %p798 = pneg %p103
        $region34: #{tpu_custom_call.1} parent=31 // pred_check_branch
          %800 = sbr.rel (%p798) target = $region36
        $region35: #{tpu_custom_call.1} parent=31 // pred_region
          %s802 = ssub.s32 640, 640
          %803 = vsyncadd %s794, %s802
          %s804 = smul.addr %s17, 5
          %s805 = smul.addr %s804, 128
          %s806 = scalar_lea.hbm %s3, %s805
          %s808 = sshll.u32 %s797, 4
          %s809 = int_to_ptr.vmem [resolvable:$true] %s808
          %811 = dma.vmem_to_hbm [thread:$0]  %s809, 640, %s806, %s794
        $region36: #{tpu_custom_call.1} parent=31 // pred_fallthru
          _
      $region32: #{tpu_custom_call.1} parent=5 // pred_fallthru
        _
      %p812 = scmp.le.s32.totalorder 2, %s12
      // Predicated region
      $region37: #{tpu_custom_call.1} parent=5 // pred_check
        %p813 = pneg %p812
      $region38: #{tpu_custom_call.1} parent=5 // pred_check_branch
        %815 = sbr.rel (%p813) target = $region40
      $region39: #{tpu_custom_call.1} parent=5 // pred_region
        %s816 = ssub.s32 %s12, 2
        // Predicated region
        $region41: #{tpu_custom_call.1} parent=39 // pred_check
          %p817 = pneg %p109
        $region42: #{tpu_custom_call.1} parent=39 // pred_check_branch
          %819 = sbr.rel (%p817) target = $region44
        $region43: #{tpu_custom_call.1} parent=39 // pred_region
          %s820 = sand.u32 %s94, 1
          %s821 = scalar_lea.sflag [#allocation3], %s820
          %s822 = sand.u32 %s94, 1
          %s823 = smul.addr %s822, 40
          %s824 = scalar_lea.vmem [#allocation2], %s823
          %825 = dma.done %s821, 640
        $region44: #{tpu_custom_call.1} parent=39 // pred_fallthru
          _
      $region40: #{tpu_custom_call.1} parent=5 // pred_fallthru
        _
    $region6: #{tpu_custom_call.1} parent=1 // loop_footer
      %s16 = sadd.s32 1, %s12
    $region7: #{tpu_custom_call.1} parent=1 // loop_footer_branch
      %11 = sbr.rel target = $region3
    $region8: #{tpu_custom_call.1} parent=1 // loop_exit
      _
    %826 = vsyncpa [#allocation3], 1
    %s827 = scalar_lea.sflag [#allocation3], 1
    %828 = vsyncpa %s827, 1

</llo_original>
